<compile_context>
chip_gen: v7x
topology: tpu7x:2x2x1
jax: 0.10.0
libtpu: 0.0.40
codegen_flags: <defaults>
</compile_context>

<pallas_src>
import math
import functools

import jax
import jax.numpy as jnp
from jax.experimental import pallas as pl
from jax.experimental.pallas import tpu as pltpu


_EPS = 1e-5  # torch.nn.LayerNorm default


def _layernorm(v, g, b):
    mu = jnp.mean(v, axis=-1, keepdims=True)
    var = jnp.mean((v - mu) ** 2, axis=-1, keepdims=True)
    return (v - mu) * jax.lax.rsqrt(var + _EPS) * g + b


# ---------------------------------------------------------------------------
# Pass 1: LN1 + K/V projections (token-tiled, natural lane-dense (B, N, D) layout)
# ---------------------------------------------------------------------------
def kv_kernel(x_ref, g_ref, b_ref, wkv_ref, k_ref, v_ref):
    x = x_ref[0].astype(jnp.float32)                          # (TT, D)
    D = x.shape[-1]
    xn = _layernorm(x, g_ref[0], b_ref[0])
    kv = jnp.dot(xn.astype(jnp.bfloat16), wkv_ref[...],       # bf16 x bf16 -> f32 acc
                 preferred_element_type=jnp.float32)          # (TT, 2D)
    k_ref[0] = kv[:, :D].astype(jnp.bfloat16)
    v_ref[0] = kv[:, D:].astype(jnp.bfloat16)


# ---------------------------------------------------------------------------
# Pass 2: Q proj + attention + full-depth output proj + residual + LN2 + MLP + residual
# ---------------------------------------------------------------------------
def attn_mlp_kernel(x_ref, k_ref, v_ref,
                    ln1_g_ref, ln1_b_ref, wq_ref, wproj_ref, bproj_ref,
                    ln2_g_ref, ln2_b_ref, w1_ref, b1_ref, w2_ref, b2_ref,
                    o_ref, o_cat_ref, *, num_heads, scale):
    x = x_ref[0].astype(jnp.float32)                          # (TQ, D)
    D = x.shape[-1]
    Dh = D // num_heads

    # Q for this token tile (LN1 recomputed on the tile, 1/sqrt(Dh) folded into q).
    xn1 = _layernorm(x, ln1_g_ref[0], ln1_b_ref[0])
    q = (jnp.dot(xn1.astype(jnp.bfloat16), wq_ref[...],
                 preferred_element_type=jnp.float32) * scale).astype(jnp.bfloat16)

    # Per-head attention via static lane slices: no reshapes / transposes in-kernel.
    for h in range(num_heads):
        sl = slice(h * Dh, (h + 1) * Dh)
        q_h = q[:, sl]                                        # (TQ, Dh) bf16
        k_h = k_ref[0, :, sl]                                 # (N,  Dh) bf16
        v_h = v_ref[0, :, sl]                                 # (N,  Dh) bf16

        s = jax.lax.dot_general(q_h, k_h, (((1,), (1,)), ((), ())),
                                preferred_element_type=jnp.float32)   # (TQ, N)
        s = s - jnp.max(s, axis=-1, keepdims=True)
        p = jnp.exp(s)
        p = p * pl.reciprocal(jnp.sum(p, axis=-1, keepdims=True), approx=True)

        o_h = jnp.dot(p.astype(jnp.bfloat16), v_h,
                      preferred_element_type=jnp.float32)     # (TQ, Dh)
        o_cat_ref[:, sl] = o_h                                # assemble (TQ, D)

    # Single full-depth output projection: (TQ, D) @ (D, D) on the MXU.
    attn = jnp.dot(o_cat_ref[...].astype(jnp.bfloat16), wproj_ref[...],
                   preferred_element_type=jnp.float32) + bproj_ref[0]

    x1 = x + attn                                             # residual 1

    xn2 = _layernorm(x1, ln2_g_ref[0], ln2_b_ref[0])
    h1 = jnp.dot(xn2.astype(jnp.bfloat16), w1_ref[...],
                 preferred_element_type=jnp.float32) + b1_ref[0]
    # exact GELU (erf form) to match torch.nn.GELU default
    # TODO(synk): on v5e a tanh-approx GELU (EUP) could replace erf if tolerance permits.
    h1 = 0.5 * h1 * (1.0 + jax.lax.erf(h1 * (1.0 / math.sqrt(2.0))))
    mlp = jnp.dot(h1.astype(jnp.bfloat16), w2_ref[...],
                  preferred_element_type=jnp.float32) + b2_ref[0]

    o_ref[0] = (x1 + mlp).astype(o_ref.dtype)                 # residual 2


# ---------------------------------------------------------------------------
# Wrapper
# ---------------------------------------------------------------------------
def _vmem_capacity_bytes():
    try:
        return int(pltpu.get_tpu_info().vmem_capacity_bytes)
    except Exception:
        return 128 * 1024 * 1024


def _choose_tile(n, target):
    """Largest token tile <= target that divides n and is a multiple of 8 (or n itself)."""
    if n <= target:
        return n
    t = (target // 8) * 8
    while t >= 8:
        if n % t == 0:
            return t
        t -= 8
    return n


def encoder_block(x, params, num_heads, *, token_tile=None):
    B, N, D = x.shape
    Hm = params["w1"].shape[1]           # MLP hidden size
    Dh = D // num_heads
    scale = Dh ** -0.5

    vmem_cap = _vmem_capacity_bytes()
    # ~3/4 of physical VMEM, capped: ~48 MB on v7x (64 MiB), ~96 MB on v5e/v6e (128 MiB).
    vmem_limit = min(vmem_cap * 3 // 4, 100 * 1024 * 1024)
    if token_tile is None:
        # Bigger tiles amortize per-grid-step overhead where VMEM allows (v5e/v6e);
        # stay at 256 on v7x-class chips with 64 MiB VMEM.
        token_tile = 512 if vmem_cap >= 128 * 1024 * 1024 else 256
    TT = _choose_tile(N, token_tile)

    # bf16 weights for the MXU (f32 accumulation inside the kernels).
    wqkv = params["wqkv"].astype(jnp.bfloat16)
    wq = wqkv[:, :D]                     # Q projection (used in pass 2)
    wkv = wqkv[:, D:]                    # K/V projections (used in pass 1)
    wproj = params["wproj"].astype(jnp.bfloat16)
    w1 = params["w1"].astype(jnp.bfloat16)
    w2 = params["w2"].astype(jnp.bfloat16)

    def const_spec(shape):
        nd = len(shape)
        imap = lambda b, t, _n=nd: (0,) * _n
        try:  # single-buffer constant-index weights/biases (halves their VMEM footprint)
            return pl.BlockSpec(shape, imap, pipeline_mode=pl.Buffered(1))
        except TypeError:
            return pl.BlockSpec(shape, imap)

    # ---- pass 1: LN1 + K/V (natural layout, no head-major relayout anywhere) ----
    k, v = pl.pallas_call(
        kv_kernel,
        out_shape=[jax.ShapeDtypeStruct((B, N, D), jnp.bfloat16)] * 2,
        grid=(B, N // TT),
        in_specs=[
            pl.BlockSpec((1, TT, D), lambda b, t: (b, t, 0)),   # x tile
            const_spec((1, D)), const_spec((1, D)),             # ln1 gamma/beta
            const_spec((D, 2 * D)),                             # K/V weight (no bias)
        ],
        out_specs=[pl.BlockSpec((1, TT, D), lambda b, t: (b, t, 0))] * 2,
        compiler_params=pltpu.CompilerParams(
            dimension_semantics=("parallel", "parallel"),
            vmem_limit_bytes=vmem_limit),
    )(x, params["ln1_g"], params["ln1_b"], wkv)

    # ---- pass 2: Q + attention + proj + residual + LN2 + MLP + residual ----
    out = pl.pallas_call(
        functools.partial(attn_mlp_kernel, num_heads=num_heads, scale=scale),
        out_shape=jax.ShapeDtypeStruct((B, N, D), x.dtype),
        grid=(B, N // TT),
        in_specs=[
            pl.BlockSpec((1, TT, D), lambda b, t: (b, t, 0)),   # x tile (residual)
            pl.BlockSpec((1, N, D), lambda b, t: (b, 0, 0)),    # K (resident per batch)
            pl.BlockSpec((1, N, D), lambda b, t: (b, 0, 0)),    # V (resident per batch)
            const_spec((1, D)), const_spec((1, D)),             # ln1 gamma/beta
            const_spec((D, D)),                                 # Wq
            const_spec((D, D)), const_spec((1, D)),             # Wproj, bproj
            const_spec((1, D)), const_spec((1, D)),             # ln2 gamma/beta
            const_spec((D, Hm)), const_spec((1, Hm)),           # fc1 weight/bias
            const_spec((Hm, D)), const_spec((1, D)),            # fc2 weight/bias
        ],
        out_specs=pl.BlockSpec((1, TT, D), lambda b, t: (b, t, 0)),
        scratch_shapes=[pltpu.VMEM((TT, D), jnp.float32)],      # per-head output assembly
        compiler_params=pltpu.CompilerParams(
            # Token axis "arbitrary" so K/V (block index depends only on b)
            # stay resident per batch instead of being re-fetched per token tile.
            dimension_semantics=("parallel", "arbitrary"),
            vmem_limit_bytes=vmem_limit),
    )(x, k, v, params["ln1_g"], params["ln1_b"], wq, wproj, params["bproj"],
      params["ln2_g"], params["ln2_b"], w1, params["b1"], w2, params["b2"])

    return out


# ---------------------------------------------------------------------------
# Params + pure-JAX reference (PyTorch eval-mode forward)
# ---------------------------------------------------------------------------
def init_params(key, D, H):
    ks = jax.random.split(key, 4)
    return {
        "ln1_g": jnp.ones((1, D), jnp.float32),
        "ln1_b": jnp.zeros((1, D), jnp.float32),
        "wqkv": 0.02 * jax.random.normal(ks[0], (D, 3 * D), jnp.float32),
        "wproj": 0.02 * jax.random.normal(ks[1], (D, D), jnp.float32),
        "bproj": jnp.zeros((1, D), jnp.float32),
        "ln2_g": jnp.ones((1, D), jnp.float32),
        "ln2_b": jnp.zeros((1, D), jnp.float32),
        "w1": 0.02 * jax.random.normal(ks[2], (D, H), jnp.float32),
        "b1": jnp.zeros((1, H), jnp.float32),
        "w2": 0.02 * jax.random.normal(ks[3], (H, D), jnp.float32),
        "b2": jnp.zeros((1, D), jnp.float32),
    }


def reference_block(x, p, num_heads):
    B, N, D = x.shape
    Dh = D // num_heads
    scale = Dh ** -0.5

    def ln(v, g, b):
        mu = jnp.mean(v, -1, keepdims=True)
        var = jnp.mean((v - mu) ** 2, -1, keepdims=True)
        return (v - mu) / jnp.sqrt(var + _EPS) * g + b

    xn = ln(x, p["ln1_g"][0], p["ln1_b"][0])
    qkv = xn @ p["wqkv"]
    qkv = qkv.reshape(B, N, 3, num_heads, Dh).transpose(2, 0, 3, 1, 4)
    q, k, v = qkv[0], qkv[1], qkv[2]
    att = (q @ jnp.swapaxes(k, -2, -1)) * scale
    att = jax.nn.softmax(att, axis=-1)
    o = (att @ v).transpose(0, 2, 1, 3).reshape(B, N, D)
    o = o @ p["wproj"] + p["bproj"][0]
    x1 = x + o
    xn2 = ln(x1, p["ln2_g"][0], p["ln2_b"][0])
    h = xn2 @ p["w1"] + p["b1"][0]
    h = jax.nn.gelu(h, approximate=False)
    return x1 + h @ p["w2"] + p["b2"][0]


if __name__ == "__main__":
    B, N, D = 2, 8, 32          # batch, tokens, embed dim (small test shapes)
    num_heads = 4
    H = int(D * 4.0)            # mlp_ratio = 4.0

    key = jax.random.PRNGKey(0)
    kx, kp = jax.random.split(key)
    x = jax.random.normal(kx, (B, N, D), jnp.float32)
    params = init_params(kp, D, H)

    out = jax.block_until_ready(encoder_block(x, params, num_heads))
    ref = reference_block(x, params, num_heads)

    assert out.shape == (B, N, D)
    max_err = float(jnp.max(jnp.abs(out - ref)))
    # bf16 MXU operands (f32 accumulation) -> loosened tolerance vs the pure-f32 reference.
    assert jnp.allclose(out, ref, atol=2e-2, rtol=2e-2), max_err

    print("KERNEL_OK")
</pallas_src>

<mosaic_0001>
module attributes {stable_mosaic.version = 11 : i64} {
  func.func @kv_kernel(%arg0: i32, %arg1: i32, %arg2: memref<1x8x32xf32, #tpu.memory_space<vmem>>, %arg3: memref<1x32xf32, #tpu.memory_space<vmem>>, %arg4: memref<1x32xf32, #tpu.memory_space<vmem>>, %arg5: memref<32x64xbf16, #tpu.memory_space<vmem>>, %arg6: memref<1x8x32xbf16, #tpu.memory_space<vmem>>, %arg7: memref<1x8x32xbf16, #tpu.memory_space<vmem>>) attributes {dimension_semantics = [#tpu.dimension_semantics<parallel>, #tpu.dimension_semantics<parallel>], iteration_bounds = array<i64: 2, 1>, scalar_prefetch = 0 : i64, scratch_operands = 0 : i64, tpu.core_type = #tpu.core_type<tc>, window_params = [{transform_indices = @transform_0, window_bounds = array<i64: 1, 8, 32>}, {pipeline_mode = #tpu.pipeline_mode<synchronous>, transform_indices = @transform_1, window_bounds = array<i64: 1, 32>}, {pipeline_mode = #tpu.pipeline_mode<synchronous>, transform_indices = @transform_2, window_bounds = array<i64: 1, 32>}, {pipeline_mode = #tpu.pipeline_mode<synchronous>, transform_indices = @transform_3, window_bounds = array<i64: 32, 64>}, {transform_indices = @transform_4, window_bounds = array<i64: 1, 8, 32>}, {transform_indices = @transform_5, window_bounds = array<i64: 1, 8, 32>}]} {
    %c0 = arith.constant 0 : index
    %c0_0 = arith.constant 0 : index
    %c0_1 = arith.constant 0 : index
    %0 = vector.load %arg2[%c0, %c0_0, %c0_1] : memref<1x8x32xf32, #tpu.memory_space<vmem>>, vector<1x8x32xf32>
    %1 = vector.shape_cast %0 : vector<1x8x32xf32> to vector<8x32xf32>
    %c0_2 = arith.constant 0 : index
    %c0_3 = arith.constant 0 : index
    %2 = vector.load %arg3[%c0_2, %c0_3] : memref<1x32xf32, #tpu.memory_space<vmem>>, vector<1x32xf32>
    %3 = vector.shape_cast %2 : vector<1x32xf32> to vector<32xf32>
    %c0_4 = arith.constant 0 : index
    %c0_5 = arith.constant 0 : index
    %4 = vector.load %arg4[%c0_4, %c0_5] : memref<1x32xf32, #tpu.memory_space<vmem>>, vector<1x32xf32>
    %5 = vector.shape_cast %4 : vector<1x32xf32> to vector<32xf32>
    %cst = arith.constant dense<0.000000e+00> : vector<8xf32>
    %6 = vector.multi_reduction <add>, %1, %cst [1] : vector<8x32xf32> to vector<8xf32>
    %7 = vector.shape_cast %6 : vector<8xf32> to vector<8x1xf32>
    %cst_6 = arith.constant 3.200000e+01 : f32
    %8 = vector.broadcast %cst_6 : f32 to vector<8x1xf32>
    %9 = arith.divf %7, %8 : vector<8x1xf32>
    %10 = vector.broadcast %9 : vector<8x1xf32> to vector<8x32xf32>
    %11 = arith.subf %1, %10 : vector<8x32xf32>
    %12 = arith.mulf %11, %11 : vector<8x32xf32>
    %cst_7 = arith.constant dense<0.000000e+00> : vector<8xf32>
    %13 = vector.multi_reduction <add>, %12, %cst_7 [1] : vector<8x32xf32> to vector<8xf32>
    %14 = vector.shape_cast %13 : vector<8xf32> to vector<8x1xf32>
    %cst_8 = arith.constant 3.200000e+01 : f32
    %15 = vector.broadcast %cst_8 : f32 to vector<8x1xf32>
    %16 = arith.divf %14, %15 : vector<8x1xf32>
    %17 = vector.broadcast %9 : vector<8x1xf32> to vector<8x32xf32>
    %18 = arith.subf %1, %17 : vector<8x32xf32>
    %cst_9 = arith.constant 9.99999974E-6 : f32
    %19 = vector.broadcast %cst_9 : f32 to vector<8x1xf32>
    %20 = arith.addf %16, %19 : vector<8x1xf32>
    %21 = math.rsqrt %20 : vector<8x1xf32>
    %22 = vector.broadcast %21 : vector<8x1xf32> to vector<8x32xf32>
    %23 = arith.mulf %18, %22 : vector<8x32xf32>
    %24 = vector.shape_cast %3 : vector<32xf32> to vector<1x32xf32>
    %25 = vector.broadcast %24 : vector<1x32xf32> to vector<8x32xf32>
    %26 = arith.mulf %23, %25 : vector<8x32xf32>
    %27 = vector.shape_cast %5 : vector<32xf32> to vector<1x32xf32>
    %28 = vector.broadcast %27 : vector<1x32xf32> to vector<8x32xf32>
    %29 = arith.addf %26, %28 : vector<8x32xf32>
    %30 = arith.truncf %29 : vector<8x32xf32> to vector<8x32xbf16>
    %c0_10 = arith.constant 0 : index
    %c0_11 = arith.constant 0 : index
    %31 = vector.load %arg5[%c0_10, %c0_11] : memref<32x64xbf16, #tpu.memory_space<vmem>>, vector<32x64xbf16>
    %cst_12 = arith.constant dense<0.000000e+00> : vector<8x64xf32>
    %32 = tpu.matmul %30, %31, %cst_12 {dimension_numbers = #tpu.dot_dimension_numbers<[1], [0], [0], [1], [0, 0, 1, 1], [], []>} : vector<8x32xbf16>, vector<32x64xbf16>, vector<8x64xf32> -> vector<8x64xf32>
    %33 = vector.extract_strided_slice %32 {offsets = [0, 0], sizes = [8, 32], strides = [1, 1]} : vector<8x64xf32> to vector<8x32xf32>
    %34 = arith.truncf %33 : vector<8x32xf32> to vector<8x32xbf16>
    %c0_13 = arith.constant 0 : index
    %c0_14 = arith.constant 0 : index
    %c0_15 = arith.constant 0 : index
    %35 = vector.load %arg6[%c0_13, %c0_14, %c0_15] : memref<1x8x32xbf16, #tpu.memory_space<vmem>>, vector<1x8x32xbf16>
    %36 = vector.shape_cast %35 : vector<1x8x32xbf16> to vector<8x32xbf16>
    %37 = vector.shape_cast %34 : vector<8x32xbf16> to vector<1x8x32xbf16>
    tpu.vector_store %arg6[%c0_13, %c0_14, %c0_15], %37 {strides = array<i32>} : memref<1x8x32xbf16, #tpu.memory_space<vmem>>, vector<1x8x32xbf16>,
    %38 = vector.extract_strided_slice %32 {offsets = [0, 32], sizes = [8, 32], strides = [1, 1]} : vector<8x64xf32> to vector<8x32xf32>
    %39 = arith.truncf %38 : vector<8x32xf32> to vector<8x32xbf16>
    %c0_16 = arith.constant 0 : index
    %c0_17 = arith.constant 0 : index
    %c0_18 = arith.constant 0 : index
    %40 = vector.load %arg7[%c0_16, %c0_17, %c0_18] : memref<1x8x32xbf16, #tpu.memory_space<vmem>>, vector<1x8x32xbf16>
    %41 = vector.shape_cast %40 : vector<1x8x32xbf16> to vector<8x32xbf16>
    %42 = vector.shape_cast %39 : vector<8x32xbf16> to vector<1x8x32xbf16>
    tpu.vector_store %arg7[%c0_16, %c0_17, %c0_18], %42 {strides = array<i32>} : memref<1x8x32xbf16, #tpu.memory_space<vmem>>, vector<1x8x32xbf16>,
    return
  }
  func.func @transform_0(%arg0: i32, %arg1: i32) -> (i32, i32, i32) {
    %c0_i32 = arith.constant 0 : i32
    %c0_i32_0 = arith.constant 0 : i32
    return %arg0, %arg1, %c0_i32 : i32, i32, i32
  }
  func.func @transform_1(%arg0: i32, %arg1: i32) -> (i32, i32) {
    %c0_i32 = arith.constant 0 : i32
    %c0_i32_0 = arith.constant 0 : i32
    %c0_i32_1 = arith.constant 0 : i32
    return %c0_i32, %c0_i32_0 : i32, i32
  }
  func.func @transform_2(%arg0: i32, %arg1: i32) -> (i32, i32) {
    %c0_i32 = arith.constant 0 : i32
    %c0_i32_0 = arith.constant 0 : i32
    %c0_i32_1 = arith.constant 0 : i32
    return %c0_i32, %c0_i32_0 : i32, i32
  }
  func.func @transform_3(%arg0: i32, %arg1: i32) -> (i32, i32) {
    %c0_i32 = arith.constant 0 : i32
    %c0_i32_0 = arith.constant 0 : i32
    %c0_i32_1 = arith.constant 0 : i32
    return %c0_i32, %c0_i32_0 : i32, i32
  }
  func.func @transform_4(%arg0: i32, %arg1: i32) -> (i32, i32, i32) {
    %c0_i32 = arith.constant 0 : i32
    %c0_i32_0 = arith.constant 0 : i32
    return %arg0, %arg1, %c0_i32 : i32, i32, i32
  }
  func.func @transform_5(%arg0: i32, %arg1: i32) -> (i32, i32, i32) {
    %c0_i32 = arith.constant 0 : i32
    %c0_i32_0 = arith.constant 0 : i32
    return %arg0, %arg1, %c0_i32 : i32, i32, i32
  }
}

</mosaic_0001>

<llo_original>
// kernel: tpu_custom_call.1
$region0: #{tpu_custom_call.1}
  #allocation0 [shape = 'u32[]', space=smem, size = 0x4, offset = 0x4, fixed_abs, tag = 'smem constant byte address 0x4 - core index']
  #allocation1 [shape = 'u32[144,128]{1,0:T(1,128)}', space=vmem, size = 0x12000, scoped, tag = 'internal scratch']
  %s0 = inlined_call_operand.hbm [shape: f32[2,8,32], index: 0, kind: input, shape index: {}]
  %s1 = inlined_call_operand.hbm [shape: f32[1,32], index: 1, kind: input, shape index: {}]
  %s2 = inlined_call_operand.hbm [shape: f32[1,32], index: 2, kind: input, shape index: {}]
  %s3 = inlined_call_operand.hbm [shape: bf16[32,64], index: 3, kind: input, shape index: {}]
  %s4 = inlined_call_operand.hbm [shape: bf16[2,8,32], index: 4, kind: output, shape index: {0}]
  %s5 = inlined_call_operand.hbm [shape: bf16[2,8,32], index: 5, kind: output, shape index: {1}]
  %6 = xla_tuple %s4, %s5
  %s7 = sld [smem:[#allocation0]]
  $region73: #{tpu_custom_call.1} parent=0
    _
  %s9 = ssub.s32 1, %s7
  %s10 = scalar_select 0, %s9, %s7
  $region1: #{tpu_custom_call.1} parent=0
    #allocation2 [shape = 'u8[8192]{0}', space=vmem, size = 0x2000, scoped, tag = 'input window, operand 0']
    #allocation3 [shape = 's32[2]{0}', space=sflag, size = 0x8, scoped, tag = 'scoped memory for tpu_custom_call.1']
    #allocation4 [shape = 's32[2]{0}', space=sflag, size = 0x8, scoped, tag = 'scoped memory for tpu_custom_call.1']
    #allocation5 [shape = 'u8[512]{0}', space=vmem, size = 0x400, scoped, tag = 'input window, operand 1, single buffered']
    #allocation6 [shape = 's32[1]{0}', space=sflag, size = 0x4, scoped, tag = 'scoped memory for tpu_custom_call.1']
    #allocation7 [shape = 'u8[512]{0}', space=vmem, size = 0x400, scoped, tag = 'input window, operand 2, single buffered']
    #allocation8 [shape = 'u8[8192]{0}', space=vmem, size = 0x2000, scoped, tag = 'input window, operand 3, single buffered']
    #allocation9 [shape = 's32[1]{0}', space=sflag, size = 0x4, scoped, tag = 'scoped memory for tpu_custom_call.1']
    #allocation10 [shape = 'u8[4096]{0}', space=vmem, size = 0x1000, scoped, tag = 'output window, operand 0']
    #allocation11 [shape = 'u8[4096]{0}', space=vmem, size = 0x1000, scoped, tag = 'output window, operand 1']
    #allocation12 [shape = 's32[2]{0}', space=sflag, size = 0x8, scoped, tag = 'scoped memory for tpu_custom_call.1']
    %11 = vsyncpa [#allocation3], 0
    %s12 = scalar_lea.sflag [#allocation3], 1
    %13 = vsyncpa %s12, 0
    %14 = vsyncpa [#allocation6], 0
    %15 = vsyncpa [#allocation9], 0
    %16 = vsyncpa [#allocation4], 0
    %s17 = scalar_lea.sflag [#allocation4], 1
    %18 = vsyncpa %s17, 0
    %19 = vsyncpa [#allocation12], 0
    %s20 = scalar_lea.sflag [#allocation12], 1
    %21 = vsyncpa %s20, 0
    loop: start=0, step=1, limit=4
    $region2: #{tpu_custom_call.1} parent=1 // loop_pre_header
      _
    $region3: #{tpu_custom_call.1} parent=1 // loop_header
      %s23 = sphi 0, %s27
      %p24 = scmp.ge.s32.totalorder %s23, 4
      %s30 = sphi 0, %s42
      %s31 = sphi 0, %s38
      %s32 = sphi 0, %s30
      %s33 = sphi 0, %s31
      %s34 = sphi 0, %s32
      %s35 = sphi 0, %s33
      %s47 = sphi 0, %s49
      %s50 = sphi 0, %s47
      %s51 = sphi 0, %s50
      %s67 = sphi 0, %s51
      %s71 = sphi 0, %s71
      %s73 = sphi 0, %s71
      %s74 = sphi 0, %s73
      %s88 = sphi 0, %s74
      %s92 = sphi 0, %s92
      %s94 = sphi 0, %s92
      %s95 = sphi 0, %s94
      %s109 = sphi 0, %s95
      %s113 = sphi 0, %s113
      %s115 = sphi 0, %s113
      %s116 = sphi 0, %s115
      %s130 = sphi 0, %s116
      %s138 = sphi 0, %s140
      %s141 = sphi 0, %s138
      %s142 = sphi 0, %s141
      %s158 = sphi 0, %s142
      %s166 = sphi 0, %s168
      %s169 = sphi 0, %s166
      %s170 = sphi 0, %s169
      %s186 = sphi 0, %s170
    $region4: #{tpu_custom_call.1} parent=1 // loop_header_branch
      %26 = sbr.rel (%p24) target = $region8
    $region5: #{tpu_custom_call.1} parent=1 // loop_body
      %s28 = ssub.s32 %s23, 1
      %s29 = ssub.s32 %s23, 2
      %s36 = sadd.s32 1, %s31
      %p37 = scmp.ge.s32.totalorder %s36, 1
      %s38 = scalar_select %p37, 0, %s36
      %s39 = sadd.s32 1, %s30
      %s40 = scalar_select %p37, %s39, %s30
      %p41 = scmp.ge.s32.totalorder %s40, 2
      %s42 = scalar_select %p41, 0, %s40
      %s43 = ssub.s32 %s30, %s42
      %s44 = ssub.s32 %s31, %s38
      %s45 = sor.u32 %s43, %s44
      %p46 = scmp.eq.s32.totalorder %s45, 0
      %s48 = sadd.s32 %s47, 1
      %s49 = scalar_select %p46, %s47, %s48
      %p52 = pneg %p46
      %p53 = scmp.eq.s32.totalorder %s23, 1
      %p54 = por %p52, %p53
      %p55 = scmp.ne.s32.totalorder %s47, %s50
      %p56 = scmp.eq.s32.totalorder %s23, 0
      %p57 = por %p55, %p56
      %p58 = scmp.ne.s32.totalorder %s47, %s50
      %p59 = scmp.eq.s32.totalorder %s28, 1
      %p60 = por %p58, %p59
      %p61 = scmp.ne.s32.totalorder %s50, %s51
      %p62 = scmp.eq.s32.totalorder %s28, 0
      %p63 = por %p61, %p62
      %p64 = scmp.ne.s32.totalorder %s50, %s51
      %p65 = scmp.eq.s32.totalorder %s29, 1
      %p66 = por %p64, %p65
      %p68 = scmp.ne.s32.totalorder %s51, %s67
      %p69 = scmp.eq.s32.totalorder %s29, 0
      %p70 = por %p68, %p69
      %s72 = sadd.s32 %s71, 1
      %p75 = scmp.eq.s32.totalorder %s23, 1
      %p76 = scmp.ne.s32.totalorder %s71, %s73
      %p77 = scmp.eq.s32.totalorder %s23, 0
      %p78 = por %p76, %p77
      %p79 = scmp.ne.s32.totalorder %s71, %s73
      %p80 = scmp.eq.s32.totalorder %s28, 1
      %p81 = por %p79, %p80
      %p82 = scmp.ne.s32.totalorder %s73, %s74
      %p83 = scmp.eq.s32.totalorder %s28, 0
      %p84 = por %p82, %p83
      %p85 = scmp.ne.s32.totalorder %s73, %s74
      %p86 = scmp.eq.s32.totalorder %s29, 1
      %p87 = por %p85, %p86
      %p89 = scmp.ne.s32.totalorder %s74, %s88
      %p90 = scmp.eq.s32.totalorder %s29, 0
      %p91 = por %p89, %p90
      %s93 = sadd.s32 %s92, 1
      %p96 = scmp.eq.s32.totalorder %s23, 1
      %p97 = scmp.ne.s32.totalorder %s92, %s94
      %p98 = scmp.eq.s32.totalorder %s23, 0
      %p99 = por %p97, %p98
      %p100 = scmp.ne.s32.totalorder %s92, %s94
      %p101 = scmp.eq.s32.totalorder %s28, 1
      %p102 = por %p100, %p101
      %p103 = scmp.ne.s32.totalorder %s94, %s95
      %p104 = scmp.eq.s32.totalorder %s28, 0
      %p105 = por %p103, %p104
      %p106 = scmp.ne.s32.totalorder %s94, %s95
      %p107 = scmp.eq.s32.totalorder %s29, 1
      %p108 = por %p106, %p107
      %p110 = scmp.ne.s32.totalorder %s95, %s109
      %p111 = scmp.eq.s32.totalorder %s29, 0
      %p112 = por %p110, %p111
      %s114 = sadd.s32 %s113, 1
      %p117 = scmp.eq.s32.totalorder %s23, 1
      %p118 = scmp.ne.s32.totalorder %s113, %s115
      %p119 = scmp.eq.s32.totalorder %s23, 0
      %p120 = por %p118, %p119
      %p121 = scmp.ne.s32.totalorder %s113, %s115
      %p122 = scmp.eq.s32.totalorder %s28, 1
      %p123 = por %p121, %p122
      %p124 = scmp.ne.s32.totalorder %s115, %s116
      %p125 = scmp.eq.s32.totalorder %s28, 0
      %p126 = por %p124, %p125
      %p127 = scmp.ne.s32.totalorder %s115, %s116
      %p128 = scmp.eq.s32.totalorder %s29, 1
      %p129 = por %p127, %p128
      %p131 = scmp.ne.s32.totalorder %s116, %s130
      %p132 = scmp.eq.s32.totalorder %s29, 0
      %p133 = por %p131, %p132
      %s134 = ssub.s32 %s30, %s42
      %s135 = ssub.s32 %s31, %s38
      %s136 = sor.u32 %s134, %s135
      %p137 = scmp.eq.s32.totalorder %s136, 0
      %s139 = sadd.s32 %s138, 1
      %s140 = scalar_select %p137, %s138, %s139
      %p143 = pneg %p137
      %p144 = scmp.eq.s32.totalorder %s23, 1
      %p145 = por %p143, %p144
      %p146 = scmp.ne.s32.totalorder %s138, %s141
      %p147 = scmp.eq.s32.totalorder %s23, 0
      %p148 = por %p146, %p147
      %p149 = scmp.ne.s32.totalorder %s138, %s141
      %p150 = scmp.eq.s32.totalorder %s28, 1
      %p151 = por %p149, %p150
      %p152 = scmp.ne.s32.totalorder %s141, %s142
      %p153 = scmp.eq.s32.totalorder %s28, 0
      %p154 = por %p152, %p153
      %p155 = scmp.ne.s32.totalorder %s141, %s142
      %p156 = scmp.eq.s32.totalorder %s29, 1
      %p157 = por %p155, %p156
      %p159 = scmp.ne.s32.totalorder %s142, %s158
      %p160 = scmp.eq.s32.totalorder %s29, 0
      %p161 = por %p159, %p160
      %s162 = ssub.s32 %s30, %s42
      %s163 = ssub.s32 %s31, %s38
      %s164 = sor.u32 %s162, %s163
      %p165 = scmp.eq.s32.totalorder %s164, 0
      %s167 = sadd.s32 %s166, 1
      %s168 = scalar_select %p165, %s166, %s167
      %p171 = pneg %p165
      %p172 = scmp.eq.s32.totalorder %s23, 1
      %p173 = por %p171, %p172
      %p174 = scmp.ne.s32.totalorder %s166, %s169
      %p175 = scmp.eq.s32.totalorder %s23, 0
      %p176 = por %p174, %p175
      %p177 = scmp.ne.s32.totalorder %s166, %s169
      %p178 = scmp.eq.s32.totalorder %s28, 1
      %p179 = por %p177, %p178
      %p180 = scmp.ne.s32.totalorder %s169, %s170
      %p181 = scmp.eq.s32.totalorder %s28, 0
      %p182 = por %p180, %p181
      %p183 = scmp.ne.s32.totalorder %s169, %s170
      %p184 = scmp.eq.s32.totalorder %s29, 1
      %p185 = por %p183, %p184
      %p187 = scmp.ne.s32.totalorder %s170, %s186
      %p188 = scmp.eq.s32.totalorder %s29, 0
      %p189 = por %p187, %p188
      %p190 = scmp.le.s32.totalorder 1, %s23
      %p191 = scmp.lt.s32.totalorder %s23, 3
      %p192 = pnand %p190, %p191
      %p193 = pneg %p192
      // Predicated region
      $region9: #{tpu_custom_call.1} parent=5 // pred_check
        _
      $region10: #{tpu_custom_call.1} parent=5 // pred_check_branch
        %195 = sbr.rel (%p192) target = $region12
      $region11: #{tpu_custom_call.1} parent=5 // pred_region
        %s196 = ssub.s32 %s23, 1
        // Predicated region
        $region13: #{tpu_custom_call.1} parent=11 // pred_check
          %p197 = pneg %p84
        $region14: #{tpu_custom_call.1} parent=11 // pred_check_branch
          %199 = sbr.rel (%p197) target = $region16
        $region15: #{tpu_custom_call.1} parent=11 // pred_region
          %s201 = ssub.s32 16, 16
          %202 = vsyncadd [#allocation6], %s201
          %s204 = sshll.u32 [#allocation5], 4
          %s205 = int_to_ptr.vmem [resolvable:$true] %s204
          %207 = dma.hbm_to_vmem [thread:$0]  %s1, 16, %s205, [#allocation6]
        $region16: #{tpu_custom_call.1} parent=11 // pred_fallthru
          _
        // Predicated region
        $region17: #{tpu_custom_call.1} parent=11 // pred_check
          %p208 = pneg %p105
        $region18: #{tpu_custom_call.1} parent=11 // pred_check_branch
          %210 = sbr.rel (%p208) target = $region20
        $region19: #{tpu_custom_call.1} parent=11 // pred_region
          %s212 = ssub.s32 16, 16
          %213 = vsyncadd [#allocation6], %s212
          %s215 = sshll.u32 [#allocation7], 4
          %s216 = int_to_ptr.vmem [resolvable:$true] %s215
          %218 = dma.hbm_to_vmem [thread:$0]  %s2, 16, %s216, [#allocation6]
        $region20: #{tpu_custom_call.1} parent=11 // pred_fallthru
          _
        // Predicated region
        $region21: #{tpu_custom_call.1} parent=11 // pred_check
          %p219 = pneg %p126
        $region22: #{tpu_custom_call.1} parent=11 // pred_check_branch
          %221 = sbr.rel (%p219) target = $region24
        $region23: #{tpu_custom_call.1} parent=11 // pred_region
          %s223 = ssub.s32 256, 256
          %224 = vsyncadd [#allocation9], %s223
          %s225 = sshll.u32 [#allocation8], 4
          %s226 = int_to_ptr.vmem [resolvable:$true] %s225
          %231 = dma.hbm_to_vmem [thread:$0]  %s3, 256, %s226, [#allocation9], 64, 64, 4
        $region24: #{tpu_custom_call.1} parent=11 // pred_fallthru
          _
      $region12: #{tpu_custom_call.1} parent=5 // pred_fallthru
        _
      %p232 = scmp.lt.s32.totalorder %s23, 2
      // Predicated region
      $region25: #{tpu_custom_call.1} parent=5 // pred_check
        %p233 = pneg %p232
      $region26: #{tpu_custom_call.1} parent=5 // pred_check_branch
        %235 = sbr.rel (%p233) target = $region28
      $region27: #{tpu_custom_call.1} parent=5 // pred_region
        // Predicated region
        $region29: #{tpu_custom_call.1} parent=27 // pred_check
          %p236 = pneg %p57
        $region30: #{tpu_custom_call.1} parent=27 // pred_check_branch
          %238 = sbr.rel (%p236) target = $region32
        $region31: #{tpu_custom_call.1} parent=27 // pred_region
          %s239 = sand.u32 %s47, 1
          %s240 = scalar_lea.sflag [#allocation3], %s239
          %s241 = sand.u32 %s47, 1
          %s242 = smul.addr %s241, 8
          %s243 = scalar_lea.vmem [#allocation2], %s242
          %s245 = ssub.s32 128, 128
          %246 = vsyncadd %s240, %s245
          %s247 = sadd.s32 %s31, %s30
          %s248 = smul.addr %s247, 128
          %s249 = scalar_lea.hbm %s0, %s248
          %s251 = sshll.u32 %s243, 4
          %s252 = int_to_ptr.vmem [resolvable:$true] %s251
          %254 = dma.hbm_to_vmem [thread:$0]  %s249, 128, %s252, %s240
        $region32: #{tpu_custom_call.1} parent=27 // pred_fallthru
          _
      $region28: #{tpu_custom_call.1} parent=5 // pred_fallthru
        _
      %p255 = scmp.le.s32.totalorder 1, %s23
      %p256 = scmp.lt.s32.totalorder %s23, 3
      %p257 = pnand %p255, %p256
      %p258 = pneg %p257
      // Predicated region
      $region33: #{tpu_custom_call.1} parent=5 // pred_check
        _
      $region34: #{tpu_custom_call.1} parent=5 // pred_check_branch
        %260 = sbr.rel (%p257) target = $region36
      $region35: #{tpu_custom_call.1} parent=5 // pred_region
        %s261 = ssub.s32 %s23, 1
        %s262 = sand.u32 %s50, 1
        %s263 = scalar_lea.sflag [#allocation3], %s262
        %s264 = sand.u32 %s50, 1
        %s265 = smul.addr %s264, 8
        %s266 = scalar_lea.vmem [#allocation2], %s265
        // Predicated region
        $region37: #{tpu_custom_call.1} parent=35 // pred_check
          %p267 = pneg %p63
        $region38: #{tpu_custom_call.1} parent=35 // pred_check_branch
          %269 = sbr.rel (%p267) target = $region40
        $region39: #{tpu_custom_call.1} parent=35 // pred_region
          %270 = dma.done %s263, 128
        $region40: #{tpu_custom_call.1} parent=35 // pred_fallthru
          _
        // Predicated region
        $region41: #{tpu_custom_call.1} parent=35 // pred_check
          %p271 = pneg %p84
        $region42: #{tpu_custom_call.1} parent=35 // pred_check_branch
          %273 = sbr.rel (%p271) target = $region44
        $region43: #{tpu_custom_call.1} parent=35 // pred_region
          %274 = dma.done [#allocation6], 16
        $region44: #{tpu_custom_call.1} parent=35 // pred_fallthru
          _
        // Predicated region
        $region45: #{tpu_custom_call.1} parent=35 // pred_check
          %p275 = pneg %p105
        $region46: #{tpu_custom_call.1} parent=35 // pred_check_branch
          %277 = sbr.rel (%p275) target = $region48
        $region47: #{tpu_custom_call.1} parent=35 // pred_region
          %278 = dma.done [#allocation6], 16
        $region48: #{tpu_custom_call.1} parent=35 // pred_fallthru
          _
        // Predicated region
        $region49: #{tpu_custom_call.1} parent=35 // pred_check
          %p279 = pneg %p126
        $region50: #{tpu_custom_call.1} parent=35 // pred_check_branch
          %281 = sbr.rel (%p279) target = $region52
        $region51: #{tpu_custom_call.1} parent=35 // pred_region
          %282 = dma.done [#allocation9], 256
        $region52: #{tpu_custom_call.1} parent=35 // pred_fallthru
          _
        %s283 = sand.u32 %s50, 1
        %s284 = scalar_lea.sflag [#allocation3], %s283
        %s285 = sand.u32 %s50, 1
        %s286 = smul.addr %s285, 8
        %s287 = scalar_lea.vmem [#allocation2], %s286
        %p288 = pneg %p63
        %p289 = pneg %p60
        %p290 = pneg %p84
        %p291 = pneg %p81
        %p292 = pneg %p105
        %p293 = pneg %p102
        %p294 = pneg %p126
        %p295 = pneg %p123
        %p296 = pneg %p154
        %p297 = pneg %p151
        %s298 = sand.u32 %s141, 1
        %s299 = scalar_lea.sflag [#allocation4], %s298
        %s300 = sand.u32 %s141, 1
        %s301 = smul.addr %s300, 4
        %s302 = scalar_lea.vmem [#allocation10], %s301
        %p303 = pneg %p182
        %p304 = pneg %p179
        %s305 = sand.u32 %s169, 1
        %s306 = scalar_lea.sflag [#allocation12], %s305
        %s307 = sand.u32 %s169, 1
        %s308 = smul.addr %s307, 4
        %s309 = scalar_lea.vmem [#allocation11], %s308
        %v311 = vld [vmem:[%s266] sm:$0xff]
        %v312 = vld [vmem:[#allocation5] sm:$0x1]
        %v313 = vld [vmem:[#allocation7] sm:$0x1]
        %vm314 = vcmask 261120
        %v315 = vsel %vm314, %v311, 0.0
        %316 = vadd.xlane.f32.xlu0 %v315
        %v317 = vpop.xlane.xlu0 %316
        %v318 = vrcp.pop 32.0
        %v319 = vmul.f32 %v317, %v318
        %v320 = vsub.f32 %v311, %v319
        %v321 = vmul.f32 %v320, %v320
        %v322 = vsel %vm314, %v321, 0.0
        %323 = vadd.xlane.f32.xlu0 %v322
        %v324 = vpop.xlane.xlu0 %323
        %v325 = vmul.f32 %v324, %v318
        %v326 = vadd.f32 %v325, 1e-05
        %v327 = vrsqrt.pop %v326
        %v328 = vmul.f32 %v320, %v327
        %v330 = vlaneseq
        %v331 = vshrl.u32 %v330, 7
        %v332 = vsub.s32 0, %v331
        %v333 = vrot.slane %v312, %v332
        %v335 = vmul.f32 %v328, %v333
        %v337 = vlaneseq
        %v338 = vshrl.u32 %v337, 7
        %v339 = vsub.s32 0, %v338
        %v340 = vrot.slane %v313, %v339
        %v342 = vadd.f32 %v335, %v340
        %v343 = vpack.c.bf16 %v342, %v342
        %v344 = vld [vmem:[#allocation8] sm:$0xf]
        %v345 = vld [vmem:[#allocation8 + $0x4] sm:$0xf]
        %v346 = vld [vmem:[#allocation8 + $0x8] sm:$0xf]
        %v347 = vld [vmem:[#allocation8 + $0xc] sm:$0xf]
        %v352 = vunpack.c.l.b16 %v344
        %v353 = vunpack.c.l.b16 %v345
        %v354 = vunpack.c.l.b16 %v346
        %v355 = vunpack.c.l.b16 %v347
        %v356 = vpack.c.b16 %v353, %v352
        %v357 = vpack.c.b16 %v355, %v354
        %v361 = vsel %vm314, %v343, 0
        %363 = vmatprep.subr.bf16.mxu0 0
        %364 = vmatpush1.bf16.msra.mxu0 %v356
        %365 = vmatprep.subr.bf16.mxu0 0
        %366 = vmatpush1.bf16.msra.mxu0 %v357
        %367 = vmatprep.subr.bf16.mxu0 0
        %368 = vmatpush1.bf16.msra.mxu0 0
        %369 = vmatprep.subr.bf16.mxu0 0
        %370 = vmatpush1.bf16.msra.mxu0 0
        %371 = vmatprep.subr.bf16.mxu0 0
        %372 = vmatpush1.bf16.msra.mxu0 0
        %373 = vmatprep.subr.bf16.mxu0 0
        %374 = vmatpush1.bf16.msra.mxu0 0
        %375 = vmatprep.subr.bf16.mxu0 0
        %376 = vmatpush1.bf16.msra.mxu0 0
        %377 = vmatprep.subr.bf16.mxu0 0
        %378 = vmatpush1.bf16.msra.mxu0 0
        %379 = vmatprep.subr.bf16.mxu0 0
        %380 = vmatpush1.bf16.msra.mxu0 0
        %381 = vmatprep.subr.bf16.mxu0 0
        %382 = vmatpush1.bf16.msra.mxu0 0
        %383 = vmatprep.subr.bf16.mxu0 0
        %384 = vmatpush1.bf16.msra.mxu0 0
        %385 = vmatprep.subr.bf16.mxu0 0
        %386 = vmatpush1.bf16.msra.mxu0 0
        %387 = vmatprep.subr.bf16.mxu0 0
        %388 = vmatpush1.bf16.msra.mxu0 0
        %389 = vmatprep.subr.bf16.mxu0 0
        %390 = vmatpush1.bf16.msra.mxu0 0
        %391 = vmatprep.subr.bf16.mxu0 0
        %392 = vmatpush1.bf16.msra.mxu0 0
        %393 = vmatprep.subr.bf16.mxu0 0
        %394 = vmatpush1.bf16.msra.mxu0 0
        %395 = vmatprep.mubr.bf16.mxu0 0
        %396 = vmatmul.mubr.bf16.gmra.mrb[0].mxu0 %v361
        %v397 = vpop.f32.mrb[0].mxu0
        %v398 = vadd.f32 0.0, %v397
        %v399 = vpop.f32.mrb[0].mxu0
        %v400 = vpop.f32.mrb[0].mxu0
        %v401 = vpop.f32.mrb[0].mxu0
        %402 = vdwg.mxu0
        %v403 = vpack.c.bf16 %v398, %v398
        %vm404 = vcmask 257024
        %405 = vst.msk [vmem:[%s302] sm:$0xf] %vm404, %v403
        %v407 = vunpack.c.l.b16 %v403
        %v408 = vpack.c.b16 %v407, %v407
        %409 = vrot.lane.b32.xlu0 %v408, 96
        %v410 = vpop.permute.xlu0 %409
        %412 = vst.msk [vmem:[%s309] sm:$0xf] %vm404, %v410
        %s413 = sand.u32 %s141, 1
        %s414 = scalar_lea.sflag [#allocation4], %s413
        %s415 = sand.u32 %s141, 1
        %s416 = smul.addr %s415, 4
        %s417 = scalar_lea.vmem [#allocation10], %s416
        %s418 = sand.u32 %s169, 1
        %s419 = scalar_lea.sflag [#allocation12], %s418
        %s420 = sand.u32 %s169, 1
        %s421 = smul.addr %s420, 4
        %s422 = scalar_lea.vmem [#allocation11], %s421
        // Predicated region
        $region53: #{tpu_custom_call.1} parent=35 // pred_check
          %p423 = pneg %p151
        $region54: #{tpu_custom_call.1} parent=35 // pred_check_branch
          %425 = sbr.rel (%p423) target = $region56
        $region55: #{tpu_custom_call.1} parent=35 // pred_region
          %s427 = ssub.s32 64, 64
          %428 = vsyncadd %s414, %s427
          %s429 = sadd.s32 %s33, %s32
          %s430 = smul.addr %s429, 64
          %s431 = scalar_lea.hbm %s4, %s430
          %s433 = sshll.u32 %s417, 4
          %s434 = int_to_ptr.vmem [resolvable:$true] %s433
          %436 = dma.vmem_to_hbm [thread:$0]  %s434, 64, %s431, %s414
        $region56: #{tpu_custom_call.1} parent=35 // pred_fallthru
          _
        // Predicated region
        $region57: #{tpu_custom_call.1} parent=35 // pred_check
          %p437 = pneg %p179
        $region58: #{tpu_custom_call.1} parent=35 // pred_check_branch
          %439 = sbr.rel (%p437) target = $region60
        $region59: #{tpu_custom_call.1} parent=35 // pred_region
          %s441 = ssub.s32 64, 64
          %442 = vsyncadd %s419, %s441
          %s443 = sadd.s32 %s33, %s32
          %s444 = smul.addr %s443, 64
          %s445 = scalar_lea.hbm %s5, %s444
          %s447 = sshll.u32 %s422, 4
          %s448 = int_to_ptr.vmem [resolvable:$true] %s447
          %450 = dma.vmem_to_hbm [thread:$0]  %s448, 64, %s445, %s419
        $region60: #{tpu_custom_call.1} parent=35 // pred_fallthru
          _
      $region36: #{tpu_custom_call.1} parent=5 // pred_fallthru
        _
      %p451 = scmp.le.s32.totalorder 2, %s23
      // Predicated region
      $region61: #{tpu_custom_call.1} parent=5 // pred_check
        %p452 = pneg %p451
      $region62: #{tpu_custom_call.1} parent=5 // pred_check_branch
        %454 = sbr.rel (%p452) target = $region64
      $region63: #{tpu_custom_call.1} parent=5 // pred_region
        %s455 = ssub.s32 %s23, 2
        // Predicated region
        $region65: #{tpu_custom_call.1} parent=63 // pred_check
          %p456 = pneg %p157
        $region66: #{tpu_custom_call.1} parent=63 // pred_check_branch
          %458 = sbr.rel (%p456) target = $region68
        $region67: #{tpu_custom_call.1} parent=63 // pred_region
          %s459 = sand.u32 %s142, 1
          %s460 = scalar_lea.sflag [#allocation4], %s459
          %s461 = sand.u32 %s142, 1
          %s462 = smul.addr %s461, 4
          %s463 = scalar_lea.vmem [#allocation10], %s462
          %464 = dma.done %s460, 64
        $region68: #{tpu_custom_call.1} parent=63 // pred_fallthru
          _
        // Predicated region
        $region69: #{tpu_custom_call.1} parent=63 // pred_check
          %p465 = pneg %p185
        $region70: #{tpu_custom_call.1} parent=63 // pred_check_branch
          %467 = sbr.rel (%p465) target = $region72
        $region71: #{tpu_custom_call.1} parent=63 // pred_region
          %s468 = sand.u32 %s170, 1
          %s469 = scalar_lea.sflag [#allocation12], %s468
          %s470 = sand.u32 %s170, 1
          %s471 = smul.addr %s470, 4
          %s472 = scalar_lea.vmem [#allocation11], %s471
          %473 = dma.done %s469, 64
        $region72: #{tpu_custom_call.1} parent=63 // pred_fallthru
          _
      $region64: #{tpu_custom_call.1} parent=5 // pred_fallthru
        _
    $region6: #{tpu_custom_call.1} parent=1 // loop_footer
      %s27 = sadd.s32 1, %s23
    $region7: #{tpu_custom_call.1} parent=1 // loop_footer_branch
      %22 = sbr.rel target = $region3
    $region8: #{tpu_custom_call.1} parent=1 // loop_exit
      _
    %474 = vsyncpa [#allocation3], 1
    %s475 = scalar_lea.sflag [#allocation3], 1
    %476 = vsyncpa %s475, 1
    %477 = vsyncpa [#allocation6], 1
    %478 = vsyncpa [#allocation9], 1
    %479 = vsyncpa [#allocation4], 1
    %s480 = scalar_lea.sflag [#allocation4], 1
    %481 = vsyncpa %s480, 1
    %482 = vsyncpa [#allocation12], 1
    %s483 = scalar_lea.sflag [#allocation12], 1
    %484 = vsyncpa %s483, 1

</llo_original>
